<compile_context>
chip_gen: v6e
topology: v6e:2x2x1
jax: 0.10.0
libtpu: 0.0.40
codegen_flags: <defaults>
</compile_context>

<pallas_src>
import functools

import jax
import jax.numpy as jnp
from jax import lax
from jax.experimental import pallas as pl
from jax.experimental.pallas import tpu as pltpu


def _round_up(x, m):
    return ((x + m - 1) // m) * m


def _layernorm_kernel(x_ref, gamma_ref, beta_ref, o_ref, *, eps, inv_f):
    # x_ref: (TB, F) tile in VMEM; gamma/beta: (1, F) f32, resident across steps.
    x = x_ref[...].astype(jnp.float32)
    mean = jnp.sum(x, axis=-1, keepdims=True) * inv_f
    centered = x - mean
    var = jnp.sum(centered * centered, axis=-1, keepdims=True) * inv_f
    x_hat = centered * lax.rsqrt(var + eps)
    o_ref[...] = (gamma_ref[...] * x_hat + beta_ref[...]).astype(o_ref.dtype)


def _tile_budget():
    """(target block bytes, scoped-VMEM limit) branched on physical VMEM size."""
    try:
        vmem_bytes = pltpu.get_tpu_info().vmem_capacity_bytes
    except Exception:
        vmem_bytes = 64 * 1024 * 1024               # conservative: assume v7x
    if vmem_bytes >= 100 * 1024 * 1024:             # v5e / v6e: 128 MiB physical
        return 8 * 1024 * 1024, 64 * 1024 * 1024
    # v7x: 64 MiB physical -> smaller blocks, leave headroom for f32 temporaries.
    return 4 * 1024 * 1024, 40 * 1024 * 1024


def layer_norm_pallas(X, gamma, beta, eps=1e-5):
    """Pallas equivalent of the PyTorch `layer_norm` / `LayerNorm.forward`.

    X: 2D (B, num_features) or 3D (B, num_features, num_dims).
    gamma/beta: (1, num_features) or (1, num_features, num_dims).
    """
    assert X.ndim in (2, 3)
    orig_shape = X.shape
    B = X.shape[0]
    F = 1
    for d in X.shape[1:]:
        F *= d

    # Flattened (B, F) view; per-row normalization == torch mean over dim 1 /
    # dims (1, 2).  gamma/beta pre-cast to f32 once in the wrapper.
    x2 = X.reshape(B, F)
    g2 = gamma.reshape(1, F).astype(jnp.float32)
    b2 = beta.reshape(1, F).astype(jnp.float32)

    itemsize = jnp.dtype(x2.dtype).itemsize
    target_tile_bytes, vmem_limit = _tile_budget()

    if B <= 8:
        # Single block equal to the full array dims (allowed by the (8,128) rule).
        tb = B
    else:
        # Size by bytes, multiple of 8 sublanes.
        tb = max(8, (target_tile_bytes // (F * itemsize)) // 8 * 8)
        # Keep >= ~8 grid steps when the batch permits: DMA/compute overlap and
        # >=2 blocks so ("parallel",) can shard across v7x's two TensorCores.
        min_steps = min(8, pl.cdiv(B, 8))
        tb = min(tb, _round_up(pl.cdiv(B, min_steps), 8))
    # TODO(synk): for extremely wide F (a single 8-row block overflowing the
    # scoped VMEM budget) the feature axis would need chunking; not needed here.

    grid = (pl.cdiv(B, tb),)

    cost = pl.CostEstimate(
        flops=7 * B * F,
        transcendentals=B,
        bytes_accessed=2 * B * F * itemsize + 2 * F * 4,
    )

    kernel = functools.partial(_layernorm_kernel, eps=eps, inv_f=1.0 / F)

    out = pl.pallas_call(
        kernel,
        out_shape=jax.ShapeDtypeStruct((B, F), X.dtype),
        grid_spec=pl.GridSpec(
            grid=grid,
            in_specs=[
                pl.BlockSpec((tb, F), lambda i: (i, 0)),     # x rows (ragged last tile OK)
                pl.BlockSpec((1, F), lambda i: (0, 0)),      # gamma, grid-invariant
                pl.BlockSpec((1, F), lambda i: (0, 0)),      # beta, grid-invariant
            ],
            out_specs=pl.BlockSpec((tb, F), lambda i: (i, 0)),
        ),
        compiler_params=pltpu.CompilerParams(
            dimension_semantics=("parallel",),   # independent row blocks → megacore
            vmem_limit_bytes=vmem_limit,
        ),
        cost_estimate=cost,
    )(x2, g2, b2)

    return out.reshape(orig_shape)


def layer_norm_ref(X, gamma, beta, eps=1e-5):
    axes = tuple(range(1, X.ndim))
    mean = jnp.mean(X, axis=axes, keepdims=True)
    var = jnp.mean((X - mean) ** 2, axis=axes, keepdims=True)
    return gamma * (X - mean) / jnp.sqrt(var + eps) + beta


if __name__ == "__main__":
    key = jax.random.PRNGKey(0)
    k1, k2, k3 = jax.random.split(key, 3)

    # --- 2D case: LayerNorm(num_features=32, num_dims=2) ---
    B2, num_features_2d = 8, 32
    gamma_2d = jnp.ones((1, num_features_2d), jnp.float32)   # torch.ones(shape)
    beta_2d = jnp.zeros((1, num_features_2d), jnp.float32)   # torch.zeros(shape)
    x_2d = jax.random.normal(k1, (B2, num_features_2d), jnp.float32)

    y_2d = layer_norm_pallas(x_2d, gamma_2d, beta_2d, eps=1e-5)
    jax.block_until_ready(y_2d)
    ref_2d = layer_norm_ref(x_2d, gamma_2d, beta_2d, eps=1e-5)
    assert jnp.allclose(y_2d, ref_2d, atol=1e-5, rtol=1e-5)

    # --- 3D case: LayerNorm(num_features=4, num_dims=16) ---
    B3, num_features_3d, num_dims_3d = 2, 4, 16
    gamma_3d = jnp.ones((1, num_features_3d, num_dims_3d), jnp.float32)
    beta_3d = jnp.zeros((1, num_features_3d, num_dims_3d), jnp.float32)
    x_3d = jax.random.normal(k2, (B3, num_features_3d, num_dims_3d), jnp.float32)

    y_3d = layer_norm_pallas(x_3d, gamma_3d, beta_3d, eps=1e-5)
    jax.block_until_ready(y_3d)
    ref_3d = layer_norm_ref(x_3d, gamma_3d, beta_3d, eps=1e-5)
    assert jnp.allclose(y_3d, ref_3d, atol=1e-5, rtol=1e-5)

    # --- Larger, unaligned batch: multi-block grid + ragged last tile,
    #     feature dim not a multiple of 128 (no padding anywhere) ---
    Bt, Ft = 1000, 96
    gamma_t = jax.random.normal(k3, (1, Ft), jnp.float32) * 0.1 + 1.0
    beta_t = jax.random.normal(k1, (1, Ft), jnp.float32) * 0.1
    x_t = jax.random.normal(k2, (Bt, Ft), jnp.float32)

    y_t = layer_norm_pallas(x_t, gamma_t, beta_t, eps=1e-5)
    jax.block_until_ready(y_t)
    ref_t = layer_norm_ref(x_t, gamma_t, beta_t, eps=1e-5)
    assert jnp.allclose(y_t, ref_t, atol=1e-4, rtol=1e-4)

    print("KERNEL_OK")
</pallas_src>

<mosaic_0001>
module attributes {stable_mosaic.version = 11 : i64} {
  func.func @_layernorm_kernel(%arg0: i32, %arg1: memref<8x32xf32, #tpu.memory_space<vmem>>, %arg2: memref<1x32xf32, #tpu.memory_space<vmem>>, %arg3: memref<1x32xf32, #tpu.memory_space<vmem>>, %arg4: memref<8x32xf32, #tpu.memory_space<vmem>>) attributes {dimension_semantics = [#tpu.dimension_semantics<parallel>], iteration_bounds = array<i64: 1>, scalar_prefetch = 0 : i64, scratch_operands = 0 : i64, tpu.core_type = #tpu.core_type<tc>, window_params = [{transform_indices = @transform_0, window_bounds = array<i64: 8, 32>}, {pipeline_mode = #tpu.pipeline_mode<synchronous>, transform_indices = @transform_1, window_bounds = array<i64: 1, 32>}, {pipeline_mode = #tpu.pipeline_mode<synchronous>, transform_indices = @transform_2, window_bounds = array<i64: 1, 32>}, {transform_indices = @transform_3, window_bounds = array<i64: 8, 32>}]} {
    %c0 = arith.constant 0 : index
    %c0_0 = arith.constant 0 : index
    %0 = vector.load %arg1[%c0, %c0_0] : memref<8x32xf32, #tpu.memory_space<vmem>>, vector<8x32xf32>
    %cst = arith.constant dense<0.000000e+00> : vector<8xf32>
    %1 = vector.multi_reduction <add>, %0, %cst [1] : vector<8x32xf32> to vector<8xf32>
    %2 = vector.shape_cast %1 : vector<8xf32> to vector<8x1xf32>
    %cst_1 = arith.constant 3.125000e-02 : f32
    %3 = vector.broadcast %cst_1 : f32 to vector<8x1xf32>
    %4 = arith.mulf %2, %3 : vector<8x1xf32>
    %5 = vector.broadcast %4 : vector<8x1xf32> to vector<8x32xf32>
    %6 = arith.subf %0, %5 : vector<8x32xf32>
    %7 = arith.mulf %6, %6 : vector<8x32xf32>
    %cst_2 = arith.constant dense<0.000000e+00> : vector<8xf32>
    %8 = vector.multi_reduction <add>, %7, %cst_2 [1] : vector<8x32xf32> to vector<8xf32>
    %9 = vector.shape_cast %8 : vector<8xf32> to vector<8x1xf32>
    %cst_3 = arith.constant 3.125000e-02 : f32
    %10 = vector.broadcast %cst_3 : f32 to vector<8x1xf32>
    %11 = arith.mulf %9, %10 : vector<8x1xf32>
    %cst_4 = arith.constant 9.99999974E-6 : f32
    %12 = vector.broadcast %cst_4 : f32 to vector<8x1xf32>
    %13 = arith.addf %11, %12 : vector<8x1xf32>
    %14 = math.rsqrt %13 : vector<8x1xf32>
    %15 = vector.broadcast %14 : vector<8x1xf32> to vector<8x32xf32>
    %16 = arith.mulf %6, %15 : vector<8x32xf32>
    %c0_5 = arith.constant 0 : index
    %c0_6 = arith.constant 0 : index
    %17 = vector.load %arg2[%c0_5, %c0_6] : memref<1x32xf32, #tpu.memory_space<vmem>>, vector<1x32xf32>
    %18 = vector.broadcast %17 : vector<1x32xf32> to vector<8x32xf32>
    %19 = arith.mulf %18, %16 : vector<8x32xf32>
    %c0_7 = arith.constant 0 : index
    %c0_8 = arith.constant 0 : index
    %20 = vector.load %arg3[%c0_7, %c0_8] : memref<1x32xf32, #tpu.memory_space<vmem>>, vector<1x32xf32>
    %21 = vector.broadcast %20 : vector<1x32xf32> to vector<8x32xf32>
    %22 = arith.addf %19, %21 : vector<8x32xf32>
    %c0_9 = arith.constant 0 : index
    %c0_10 = arith.constant 0 : index
    %23 = vector.load %arg4[%c0_9, %c0_10] : memref<8x32xf32, #tpu.memory_space<vmem>>, vector<8x32xf32>
    tpu.vector_store %arg4[%c0_9, %c0_10], %22 {strides = array<i32>} : memref<8x32xf32, #tpu.memory_space<vmem>>, vector<8x32xf32>,
    return
  }
  func.func @transform_0(%arg0: i32) -> (i32, i32) {
    %c0_i32 = arith.constant 0 : i32
    %c0_i32_0 = arith.constant 0 : i32
    return %arg0, %c0_i32 : i32, i32
  }
  func.func @transform_1(%arg0: i32) -> (i32, i32) {
    %c0_i32 = arith.constant 0 : i32
    %c0_i32_0 = arith.constant 0 : i32
    %c0_i32_1 = arith.constant 0 : i32
    return %c0_i32, %c0_i32_0 : i32, i32
  }
  func.func @transform_2(%arg0: i32) -> (i32, i32) {
    %c0_i32 = arith.constant 0 : i32
    %c0_i32_0 = arith.constant 0 : i32
    %c0_i32_1 = arith.constant 0 : i32
    return %c0_i32, %c0_i32_0 : i32, i32
  }
  func.func @transform_3(%arg0: i32) -> (i32, i32) {
    %c0_i32 = arith.constant 0 : i32
    %c0_i32_0 = arith.constant 0 : i32
    return %arg0, %c0_i32 : i32, i32
  }
}

</mosaic_0001>

<llo_original>
// kernel: tpu_custom_call.1
$region0: #{tpu_custom_call.1}
  #allocation0 [shape = 'u32[]', space=smem, size = 0x4, offset = 0x4, fixed_abs, tag = 'smem constant byte address 0x4 - core index']
  #allocation1 [shape = 'u32[144,128]{1,0:T(1,128)}', space=vmem, size = 0x12000, scoped, tag = 'internal scratch']
  %s0 = inlined_call_operand.hbm [shape: f32[8,32], index: 0, kind: input, shape index: {}]
  %s1 = inlined_call_operand.vmem [shape: f32[1,32], index: 1, kind: input, shape index: {}]
  %s2 = inlined_call_operand.vmem [shape: f32[1,32], index: 2, kind: input, shape index: {}]
  %s3 = inlined_call_operand.hbm [shape: f32[8,32], index: 3, kind: output, shape index: {}]
  %s4 = sld [smem:[#allocation0]]
  $region26: #{tpu_custom_call.1} parent=0
    _
  %s6 = ssub.s32 1, %s4
  %s7 = scalar_select 0, %s6, %s4
  $region1: #{tpu_custom_call.1} parent=0
    #allocation2 [shape = 'u8[4096]{0}', space=vmem, size = 0x1000, scoped, tag = 'input window, operand 0, single buffered']
    #allocation3 [shape = 's32[1]{0}', space=sflag, size = 0x4, scoped, tag = 'scoped memory for tpu_custom_call.1']
    #allocation4 [shape = 's32[1]{0}', space=sflag, size = 0x4, scoped, tag = 'scoped memory for tpu_custom_call.1']
    #allocation5 [shape = 'u8[4096]{0}', space=vmem, size = 0x1000, scoped, tag = 'output window, operand 0, single buffered']
    %8 = vsyncpa [#allocation3], 0
    %9 = vsyncpa [#allocation4], 0
    // Predicated region
    $region2: #{tpu_custom_call.1} parent=1 // pred_check
      _
    $region3: #{tpu_custom_call.1} parent=1 // pred_check_branch
      %11 = sbr.rel (0) target = $region5
    $region4: #{tpu_custom_call.1} parent=1 // pred_region
      %s13 = ssub.s32 128, 128
      %14 = vsyncadd [#allocation3], %s13
      %s16 = sshll.u32 [#allocation2], 4
      %s17 = int_to_ptr.vmem [resolvable:$true] %s16
      %19 = dma.hbm_to_vmem [thread:$0]  %s0, 128, %s17, [#allocation3]
    $region5: #{tpu_custom_call.1} parent=1 // pred_fallthru
      _
    // Predicated region
    $region6: #{tpu_custom_call.1} parent=1 // pred_check
      _
    $region7: #{tpu_custom_call.1} parent=1 // pred_check_branch
      %21 = sbr.rel (0) target = $region9
    $region8: #{tpu_custom_call.1} parent=1 // pred_region
      _
    $region9: #{tpu_custom_call.1} parent=1 // pred_fallthru
      _
    // Predicated region
    $region10: #{tpu_custom_call.1} parent=1 // pred_check
      _
    $region11: #{tpu_custom_call.1} parent=1 // pred_check_branch
      %23 = sbr.rel (0) target = $region13
    $region12: #{tpu_custom_call.1} parent=1 // pred_region
      _
    $region13: #{tpu_custom_call.1} parent=1 // pred_fallthru
      _
    // Predicated region
    $region14: #{tpu_custom_call.1} parent=1 // pred_check
      _
    $region15: #{tpu_custom_call.1} parent=1 // pred_check_branch
      %25 = sbr.rel (0) target = $region17
    $region16: #{tpu_custom_call.1} parent=1 // pred_region
      %26 = dma.done [#allocation3], 128
    $region17: #{tpu_custom_call.1} parent=1 // pred_fallthru
      _
    %v27 = vld [vmem:[#allocation2] sm:$0xff]
    %vm28 = vcmask 261120
    %v29 = vsel %vm28, %v27, 0.0
    %30 = vadd.xlane.f32.xlu0 %v29
    %v31 = vpop.xlane.xlu0 %30
    %v32 = vmul.f32 %v31, 0.03125
    %v33 = vsub.f32 %v27, %v32
    %v34 = vmul.f32 %v33, %v33
    %v35 = vsel %vm28, %v34, 0.0
    %36 = vadd.xlane.f32.xlu0 %v35
    %v37 = vpop.xlane.xlu0 %36
    %v38 = vmul.f32 %v37, 0.03125
    %v39 = vadd.f32 %v38, 1e-05
    %v40 = vrsqrt.pop %v39
    %v41 = vmul.f32 %v33, %v40
    %v42 = vld [vmem:[%s1] sm:$0x1]
    %v44 = vlaneseq
    %v45 = vshrl.u32 %v44, 7
    %v46 = vsub.s32 0, %v45
    %v47 = vrot.slane %v42, %v46
    %v49 = vmul.f32 %v47, %v41
    %v50 = vld [vmem:[%s2] sm:$0x1]
    %v52 = vlaneseq
    %v53 = vshrl.u32 %v52, 7
    %v54 = vsub.s32 0, %v53
    %v55 = vrot.slane %v50, %v54
    %v57 = vadd.f32 %v49, %v55
    %58 = vst.msk [vmem:[#allocation5] sm:$0xff] %vm28, %v57
    // Predicated region
    $region18: #{tpu_custom_call.1} parent=1 // pred_check
      _
    $region19: #{tpu_custom_call.1} parent=1 // pred_check_branch
      %60 = sbr.rel (0) target = $region21
    $region20: #{tpu_custom_call.1} parent=1 // pred_region
      %s62 = ssub.s32 128, 128
      %63 = vsyncadd [#allocation4], %s62
      %s65 = sshll.u32 [#allocation5], 4
      %s66 = int_to_ptr.vmem [resolvable:$true] %s65
      %68 = dma.vmem_to_hbm [thread:$0]  %s66, 128, %s3, [#allocation4]
    $region21: #{tpu_custom_call.1} parent=1 // pred_fallthru
      _
    // Predicated region
    $region22: #{tpu_custom_call.1} parent=1 // pred_check
      _
    $region23: #{tpu_custom_call.1} parent=1 // pred_check_branch
      %70 = sbr.rel (0) target = $region25
    $region24: #{tpu_custom_call.1} parent=1 // pred_region
      %71 = dma.done [#allocation4], 128
    $region25: #{tpu_custom_call.1} parent=1 // pred_fallthru
      _
    %72 = vsyncpa [#allocation3], 1
    %73 = vsyncpa [#allocation4], 1

</llo_original>
